<compile_context>
chip_gen: v6e
topology: v6e:2x2x1
jax: 0.10.0
libtpu: 0.0.40
codegen_flags: <defaults>
</compile_context>

<pallas_src>
import functools

import jax
import jax.numpy as jnp
from jax import lax
from jax.experimental import pallas as pl
from jax.experimental.pallas import tpu as pltpu


CLASS_PAD = 128  # pad the 2 "ways" to a full lane so every store is unmasked


def _round_up(n, m):
    return (n + m - 1) // m * m


def pn_kernel(x_ref, lbl_ref, w1_ref, b1_ref, w2_ref, b2_ref, out_ref, *, ns):
    """out = -||embed(query) - prototypes||_2, lane-padded to [Nq, CLASS_PAD].

    x_ref   : [ns + nq, D]     bf16  support rows first, then query rows
    lbl_ref : [1, ns]          int32 support labels (-1 on padded rows)
    w1_ref  : [D, H]           bf16
    b1_ref  : [1, H]           f32
    w2_ref  : [H, E]           bf16  (E pre-padded to 128 lanes)
    b2_ref  : [1, E]           f32
    out_ref : [nq, CLASS_PAD]  f32
    """
    # ---- single batched MLP embed (support + query rows together) ----------
    # bf16 operands -> single MXU pass; f32 accumulation for the post-ops.
    h = jnp.dot(x_ref[...], w1_ref[...],
                preferred_element_type=jnp.float32) + b1_ref[...]
    h = jnp.maximum(h, 0.0)
    emb = jnp.dot(h.astype(jnp.bfloat16), w2_ref[...],
                  preferred_element_type=jnp.float32) + b2_ref[...]   # [Ntot, E] f32

    emb_s = emb[:ns]          # static slices of a VMEM value (8-row aligned) are free
    emb_q = emb[ns:]

    # ---- prototypes in one MXU matmul ---------------------------------------
    # avg[c, j] = 1/count_c for support row j of class c, 0 otherwise; an empty
    # class yields a zero prototype exactly like the guarded PyTorch branch.
    cls = lax.broadcasted_iota(jnp.int32, (CLASS_PAD, ns), 0)          # row = class id
    onehot = (cls == lbl_ref[...]).astype(jnp.float32)                 # [CPAD, ns]
    counts = jnp.sum(onehot, axis=1, keepdims=True)                    # [CPAD, 1]
    avg = onehot / jnp.maximum(counts, 1.0)                            # [CPAD, ns]
    protos = jnp.dot(avg, emb_s, preferred_element_type=jnp.float32)   # [CPAD, E]

    # ---- squared distances via ||q||^2 + ||p||^2 - 2 q.p (query rows only) --
    # Contract on the shared last (lane) dim -> transposed-RHS MXU push, no
    # materialized transpose; the only VPU reduce keeps its [rows, 1] layout.
    cn = (((1,), (1,)), ((), ()))
    cross = lax.dot_general(emb_q, protos, cn,
                            preferred_element_type=jnp.float32)        # [Nq, CPAD]
    ones_row = jnp.ones((1, protos.shape[1]), jnp.float32)
    p_sq = lax.dot_general(ones_row, protos * protos, cn,
                           preferred_element_type=jnp.float32)         # [1, CPAD]
    q_sq = jnp.sum(emb_q * emb_q, axis=-1, keepdims=True)              # [Nq, 1]

    dist2 = jnp.maximum(q_sq + p_sq - 2.0 * cross, 0.0)   # clamp fp cancellation
    out_ref[...] = -jnp.sqrt(dist2)                       # lane-dense [Nq, CPAD]


def prototypical_network_forward(support_img, query_img, support_labels, params,
                                 num_classes=2):
    """JAX glue: flatten NCHW, pad rows/lanes, cast MXU operands, run the kernel."""
    w1, b1, w2, b2 = params
    ns = support_img.shape[0]
    nq = query_img.shape[0]
    ns_pad = _round_up(ns, 8)   # f32 sublane tile -> unmasked stores / full vregs
    nq_pad = _round_up(nq, 8)

    s = support_img.reshape(ns, -1)
    q = query_img.reshape(nq, -1)
    s = jnp.pad(s, ((0, ns_pad - ns), (0, 0)))
    q = jnp.pad(q, ((0, nq_pad - nq), (0, 0)))
    x = jnp.concatenate([s, q], axis=0).astype(jnp.bfloat16)           # [Ntot, D]

    # Raw labels, padded support rows get -1 so they never match a class.
    lbl = jnp.full((1, ns_pad), -1, jnp.int32)
    lbl = lbl.at[0, :ns].set(support_labels.reshape(-1).astype(jnp.int32))

    # Pad the embedding dim to a full 128-lane width (zero columns don't change
    # any distance) and cast the MXU weight operands to bf16.
    emb_pad = _round_up(w2.shape[1], 128)
    w1b = w1.astype(jnp.bfloat16)
    b1f = b1.reshape(1, -1).astype(jnp.float32)
    w2p = jnp.pad(w2, ((0, 0), (0, emb_pad - w2.shape[1]))).astype(jnp.bfloat16)
    b2p = jnp.pad(b2.reshape(1, -1),
                  ((0, 0), (0, emb_pad - b2.shape[-1]))).astype(jnp.float32)

    vmem = pl.BlockSpec(memory_space=pltpu.MemorySpace.VMEM)
    out = pl.pallas_call(
        functools.partial(pn_kernel, ns=ns_pad),
        out_shape=jax.ShapeDtypeStruct((nq_pad, CLASS_PAD), jnp.float32),
        in_specs=[vmem] * 6,
        out_specs=vmem,
    )(x, lbl, w1b, b1f, w2p, b2p)

    # Real query rows, first `num_classes` lanes (the module hard-codes 2 ways).
    return out[:nq, :num_classes]


def reference_forward(support_img, query_img, support_labels, params):
    """Pure-JAX f32 reference mirroring the PyTorch module semantics."""
    w1, b1, w2, b2 = params
    ns = support_img.shape[0]
    nq = query_img.shape[0]
    s = support_img.reshape(ns, -1).astype(jnp.float32)
    q = query_img.reshape(nq, -1).astype(jnp.float32)

    def embed(x):
        return jnp.maximum(x @ w1 + b1, 0.0) @ w2 + b2

    s_emb = embed(s)
    q_emb = embed(q)
    protos = []
    for label in (0, 1):
        mask = (support_labels == label).astype(jnp.float32)[:, None]
        cnt = mask.sum()
        proto = jnp.where(cnt > 0,
                          (mask * s_emb).sum(0) / jnp.maximum(cnt, 1.0),
                          jnp.zeros((s_emb.shape[1],), jnp.float32))
        protos.append(proto)
    protos = jnp.stack(protos)                                   # [2, E]
    diff = q_emb[:, None, :] - protos[None, :, :]
    dist = jnp.sqrt(jnp.sum(diff * diff, axis=-1))
    return -dist


if __name__ == "__main__":
    # Small episode: 8 support / 8 query images of shape [4, 8, 8] (NCHW).
    NS, NQ, C, H, W = 8, 8, 4, 8, 8
    D_IN = C * H * W          # 256
    HID = 128
    EMB = 64                  # padded to 128 lanes inside the wrapper

    key = jax.random.PRNGKey(0)
    k_s, k_q, k_w1, k_w2 = jax.random.split(key, 4)

    support_img = jax.random.normal(k_s, (NS, C, H, W), dtype=jnp.float32)
    query_img = jax.random.normal(k_q, (NQ, C, H, W), dtype=jnp.float32)
    support_labels = jnp.array([0, 0, 1, 1, 0, 1, 0, 1], dtype=jnp.int32)

    # Deterministic MLP feature-extractor parameters.
    w1 = jax.random.normal(k_w1, (D_IN, HID), dtype=jnp.float32) * 0.05
    b1 = jnp.zeros((1, HID), dtype=jnp.float32)
    w2 = jax.random.normal(k_w2, (HID, EMB), dtype=jnp.float32) * 0.05
    b2 = jnp.zeros((1, EMB), dtype=jnp.float32)
    params = (w1, b1, w2, b2)

    preds = prototypical_network_forward(support_img, query_img,
                                         support_labels, params)
    preds = jax.block_until_ready(preds)

    ref = reference_forward(support_img, query_img, support_labels, params)
    assert preds.shape == (NQ, 2)
    # Tolerance covers the bf16 MXU operands of the MLP matmuls (f32 reference)
    # plus the cdist-vs-expansion formulation difference; any semantic bug is
    # orders of magnitude larger.
    assert jnp.allclose(preds, ref, rtol=3e-2, atol=3e-2), (preds, ref)

    print("KERNEL_OK")
</pallas_src>

<mosaic_0001>
module attributes {stable_mosaic.version = 11 : i64} {
  func.func @pn_kernel(%arg0: memref<16x256xbf16, #tpu.memory_space<vmem>>, %arg1: memref<1x8xi32, #tpu.memory_space<vmem>>, %arg2: memref<256x128xbf16, #tpu.memory_space<vmem>>, %arg3: memref<1x128xf32, #tpu.memory_space<vmem>>, %arg4: memref<128x128xbf16, #tpu.memory_space<vmem>>, %arg5: memref<1x128xf32, #tpu.memory_space<vmem>>, %arg6: memref<8x128xf32, #tpu.memory_space<vmem>>) attributes {dimension_semantics = [], scalar_prefetch = 0 : i64, scratch_operands = 0 : i64, tpu.core_type = #tpu.core_type<tc>} {
    %c0 = arith.constant 0 : index
    %c0_0 = arith.constant 0 : index
    %0 = vector.load %arg0[%c0, %c0_0] : memref<16x256xbf16, #tpu.memory_space<vmem>>, vector<16x256xbf16>
    %c0_1 = arith.constant 0 : index
    %c0_2 = arith.constant 0 : index
    %1 = vector.load %arg2[%c0_1, %c0_2] : memref<256x128xbf16, #tpu.memory_space<vmem>>, vector<256x128xbf16>
    %cst = arith.constant dense<0.000000e+00> : vector<16x128xf32>
    %2 = tpu.matmul %0, %1, %cst {dimension_numbers = #tpu.dot_dimension_numbers<[1], [0], [0], [1], [0, 0, 1, 1], [], []>} : vector<16x256xbf16>, vector<256x128xbf16>, vector<16x128xf32> -> vector<16x128xf32>
    %c0_3 = arith.constant 0 : index
    %c0_4 = arith.constant 0 : index
    %3 = vector.load %arg3[%c0_3, %c0_4] : memref<1x128xf32, #tpu.memory_space<vmem>>, vector<1x128xf32>
    %4 = vector.broadcast %3 : vector<1x128xf32> to vector<16x128xf32>
    %5 = arith.addf %2, %4 : vector<16x128xf32>
    %cst_5 = arith.constant 0.000000e+00 : f32
    %6 = vector.broadcast %cst_5 : f32 to vector<16x128xf32>
    %7 = arith.maximumf %5, %6 : vector<16x128xf32>
    %8 = arith.truncf %7 : vector<16x128xf32> to vector<16x128xbf16>
    %c0_6 = arith.constant 0 : index
    %c0_7 = arith.constant 0 : index
    %9 = vector.load %arg4[%c0_6, %c0_7] : memref<128x128xbf16, #tpu.memory_space<vmem>>, vector<128x128xbf16>
    %cst_8 = arith.constant dense<0.000000e+00> : vector<16x128xf32>
    %10 = tpu.matmul %8, %9, %cst_8 {dimension_numbers = #tpu.dot_dimension_numbers<[1], [0], [0], [1], [0, 0, 1, 1], [], []>} : vector<16x128xbf16>, vector<128x128xbf16>, vector<16x128xf32> -> vector<16x128xf32>
    %c0_9 = arith.constant 0 : index
    %c0_10 = arith.constant 0 : index
    %11 = vector.load %arg5[%c0_9, %c0_10] : memref<1x128xf32, #tpu.memory_space<vmem>>, vector<1x128xf32>
    %12 = vector.broadcast %11 : vector<1x128xf32> to vector<16x128xf32>
    %13 = arith.addf %10, %12 : vector<16x128xf32>
    %14 = vector.extract_strided_slice %13 {offsets = [0, 0], sizes = [8, 128], strides = [1, 1]} : vector<16x128xf32> to vector<8x128xf32>
    %15 = vector.extract_strided_slice %13 {offsets = [8, 0], sizes = [8, 128], strides = [1, 1]} : vector<16x128xf32> to vector<8x128xf32>
    %16 = tpu.iota {dimensions = array<i32: 0>} : vector<128x8xi32>
    %c0_11 = arith.constant 0 : index
    %c0_12 = arith.constant 0 : index
    %17 = vector.load %arg1[%c0_11, %c0_12] : memref<1x8xi32, #tpu.memory_space<vmem>>, vector<1x8xi32>
    %18 = vector.broadcast %17 : vector<1x8xi32> to vector<128x8xi32>
    %19 = arith.cmpi eq, %16, %18 : vector<128x8xi32>
    %20 = arith.extui %19 : vector<128x8xi1> to vector<128x8xi32>
    %21 = arith.sitofp %20 : vector<128x8xi32> to vector<128x8xf32>
    %cst_13 = arith.constant dense<0.000000e+00> : vector<128xf32>
    %22 = vector.multi_reduction <add>, %21, %cst_13 [1] : vector<128x8xf32> to vector<128xf32>
    %23 = vector.shape_cast %22 : vector<128xf32> to vector<128x1xf32>
    %cst_14 = arith.constant 1.000000e+00 : f32
    %24 = vector.broadcast %cst_14 : f32 to vector<128x1xf32>
    %25 = arith.maximumf %23, %24 : vector<128x1xf32>
    %26 = vector.broadcast %25 : vector<128x1xf32> to vector<128x8xf32>
    %27 = arith.divf %21, %26 : vector<128x8xf32>
    %cst_15 = arith.constant dense<0.000000e+00> : vector<128x128xf32>
    %28 = tpu.matmul %27, %14, %cst_15 {dimension_numbers = #tpu.dot_dimension_numbers<[1], [0], [0], [1], [0, 0, 1, 1], [], []>} : vector<128x8xf32>, vector<8x128xf32>, vector<128x128xf32> -> vector<128x128xf32>
    %cst_16 = arith.constant dense<0.000000e+00> : vector<8x128xf32>
    %29 = tpu.matmul %15, %28, %cst_16 {dimension_numbers = #tpu.dot_dimension_numbers<[1], [1], [0], [0], [0, 0, 1, 0], [], []>} : vector<8x128xf32>, vector<128x128xf32>, vector<8x128xf32> -> vector<8x128xf32>
    %cst_17 = arith.constant 1.000000e+00 : f32
    %30 = vector.broadcast %cst_17 : f32 to vector<1x128xf32>
    %31 = arith.mulf %28, %28 : vector<128x128xf32>
    %cst_18 = arith.constant dense<0.000000e+00> : vector<1x128xf32>
    %32 = tpu.matmul %30, %31, %cst_18 {dimension_numbers = #tpu.dot_dimension_numbers<[1], [1], [0], [0], [0, 0, 1, 0], [], []>} : vector<1x128xf32>, vector<128x128xf32>, vector<1x128xf32> -> vector<1x128xf32>
    %33 = arith.mulf %15, %15 : vector<8x128xf32>
    %cst_19 = arith.constant dense<0.000000e+00> : vector<8xf32>
    %34 = vector.multi_reduction <add>, %33, %cst_19 [1] : vector<8x128xf32> to vector<8xf32>
    %35 = vector.shape_cast %34 : vector<8xf32> to vector<8x1xf32>
    %36 = vector.broadcast %35 : vector<8x1xf32> to vector<8x128xf32>
    %37 = vector.broadcast %32 : vector<1x128xf32> to vector<8x128xf32>
    %38 = arith.addf %36, %37 : vector<8x128xf32>
    %cst_20 = arith.constant 2.000000e+00 : f32
    %39 = vector.broadcast %cst_20 : f32 to vector<8x128xf32>
    %40 = arith.mulf %39, %29 : vector<8x128xf32>
    %41 = arith.subf %38, %40 : vector<8x128xf32>
    %cst_21 = arith.constant 0.000000e+00 : f32
    %42 = vector.broadcast %cst_21 : f32 to vector<8x128xf32>
    %43 = arith.maximumf %41, %42 : vector<8x128xf32>
    %44 = math.sqrt %43 : vector<8x128xf32>
    %cst_22 = arith.constant 0.000000e+00 : f32
    %45 = vector.broadcast %cst_22 : f32 to vector<8x128xf32>
    %46 = arith.subf %45, %44 : vector<8x128xf32>
    %c0_23 = arith.constant 0 : index
    %c0_24 = arith.constant 0 : index
    %47 = vector.load %arg6[%c0_23, %c0_24] : memref<8x128xf32, #tpu.memory_space<vmem>>, vector<8x128xf32>
    tpu.vector_store %arg6[%c0_23, %c0_24], %46 {strides = array<i32>} : memref<8x128xf32, #tpu.memory_space<vmem>>, vector<8x128xf32>,
    return
  }
}

</mosaic_0001>

<llo_original>
// kernel: tpu_custom_call.1
$region0: #{tpu_custom_call.1}
  #allocation0 [shape = 'u32[]', space=smem, size = 0x4, offset = 0x4, fixed_abs, tag = 'smem constant byte address 0x4 - core index']
  #allocation1 [shape = 'u32[144,128]{1,0:T(1,128)}', space=vmem, size = 0x12000, scoped, tag = 'internal scratch']
  %s0 = inlined_call_operand.hbm [shape: bf16[16,256], index: 0, kind: input, shape index: {}]
  %s1 = inlined_call_operand.vmem [shape: s32[1,8], index: 1, kind: input, shape index: {}]
  %s2 = inlined_call_operand.hbm [shape: bf16[256,128], index: 2, kind: input, shape index: {}]
  %s3 = inlined_call_operand.vmem [shape: f32[1,128], index: 3, kind: input, shape index: {}]
  %s4 = inlined_call_operand.hbm [shape: bf16[128,128], index: 4, kind: input, shape index: {}]
  %s5 = inlined_call_operand.vmem [shape: f32[1,128], index: 5, kind: input, shape index: {}]
  %s6 = inlined_call_operand.hbm [shape: f32[8,128], index: 6, kind: output, shape index: {}]
  %s7 = sld [smem:[#allocation0]]
  $region46: #{tpu_custom_call.1} parent=0
    _
  %s9 = ssub.s32 1, %s7
  %s10 = scalar_select 0, %s9, %s7
  $region1: #{tpu_custom_call.1} parent=0
    #allocation2 [shape = 'u8[8192]{0}', space=vmem, size = 0x2000, scoped, tag = 'input window, operand 0, single buffered']
    #allocation3 [shape = 's32[1]{0}', space=sflag, size = 0x4, scoped, tag = 'scoped memory for tpu_custom_call.1']
    #allocation4 [shape = 's32[1]{0}', space=sflag, size = 0x4, scoped, tag = 'scoped memory for tpu_custom_call.1']
    #allocation5 [shape = 'u8[65536]{0}', space=vmem, size = 0x10000, scoped, tag = 'input window, operand 2, single buffered']
    #allocation6 [shape = 's32[1]{0}', space=sflag, size = 0x4, scoped, tag = 'scoped memory for tpu_custom_call.1']
    #allocation7 [shape = 'u8[32768]{0}', space=vmem, size = 0x8000, scoped, tag = 'input window, operand 4, single buffered']
    #allocation8 [shape = 'u8[4096]{0}', space=vmem, size = 0x1000, scoped, tag = 'output window, operand 0, single buffered']
    %11 = vsyncpa [#allocation3], 0
    %12 = vsyncpa [#allocation6], 0
    %13 = vsyncpa [#allocation4], 0
    // Predicated region
    $region2: #{tpu_custom_call.1} parent=1 // pred_check
      _
    $region3: #{tpu_custom_call.1} parent=1 // pred_check_branch
      %15 = sbr.rel (0) target = $region5
    $region4: #{tpu_custom_call.1} parent=1 // pred_region
      %s17 = ssub.s32 256, 256
      %18 = vsyncadd [#allocation3], %s17
      %s19 = sshll.u32 [#allocation2], 4
      %s20 = int_to_ptr.vmem [resolvable:$true] %s19
      %25 = dma.hbm_to_vmem [thread:$0]  %s0, 256, %s20, [#allocation3], 128, 128, 8
    $region5: #{tpu_custom_call.1} parent=1 // pred_fallthru
      _
    // Predicated region
    $region6: #{tpu_custom_call.1} parent=1 // pred_check
      _
    $region7: #{tpu_custom_call.1} parent=1 // pred_check_branch
      %27 = sbr.rel (0) target = $region9
    $region8: #{tpu_custom_call.1} parent=1 // pred_region
      _
    $region9: #{tpu_custom_call.1} parent=1 // pred_fallthru
      _
    // Predicated region
    $region10: #{tpu_custom_call.1} parent=1 // pred_check
      _
    $region11: #{tpu_custom_call.1} parent=1 // pred_check_branch
      %29 = sbr.rel (0) target = $region13
    $region12: #{tpu_custom_call.1} parent=1 // pred_region
      %s31 = ssub.s32 2048, 2048
      %32 = vsyncadd [#allocation6], %s31
      %s33 = sshll.u32 [#allocation5], 4
      %s34 = int_to_ptr.vmem [resolvable:$true] %s33
      %39 = dma.hbm_to_vmem [thread:$0]  %s2, 2048, %s34, [#allocation6], 64, 64, 4
    $region13: #{tpu_custom_call.1} parent=1 // pred_fallthru
      _
    // Predicated region
    $region14: #{tpu_custom_call.1} parent=1 // pred_check
      _
    $region15: #{tpu_custom_call.1} parent=1 // pred_check_branch
      %41 = sbr.rel (0) target = $region17
    $region16: #{tpu_custom_call.1} parent=1 // pred_region
      _
    $region17: #{tpu_custom_call.1} parent=1 // pred_fallthru
      _
    // Predicated region
    $region18: #{tpu_custom_call.1} parent=1 // pred_check
      _
    $region19: #{tpu_custom_call.1} parent=1 // pred_check_branch
      %43 = sbr.rel (0) target = $region21
    $region20: #{tpu_custom_call.1} parent=1 // pred_region
      %s45 = ssub.s32 1024, 1024
      %46 = vsyncadd [#allocation6], %s45
      %s47 = sshll.u32 [#allocation7], 4
      %s48 = int_to_ptr.vmem [resolvable:$true] %s47
      %53 = dma.hbm_to_vmem [thread:$0]  %s4, 1024, %s48, [#allocation6], 64, 64, 4
    $region21: #{tpu_custom_call.1} parent=1 // pred_fallthru
      _
    // Predicated region
    $region22: #{tpu_custom_call.1} parent=1 // pred_check
      _
    $region23: #{tpu_custom_call.1} parent=1 // pred_check_branch
      %55 = sbr.rel (0) target = $region25
    $region24: #{tpu_custom_call.1} parent=1 // pred_region
      _
    $region25: #{tpu_custom_call.1} parent=1 // pred_fallthru
      _
    // Predicated region
    $region26: #{tpu_custom_call.1} parent=1 // pred_check
      _
    $region27: #{tpu_custom_call.1} parent=1 // pred_check_branch
      %57 = sbr.rel (0) target = $region29
    $region28: #{tpu_custom_call.1} parent=1 // pred_region
      %58 = dma.done [#allocation3], 256
    $region29: #{tpu_custom_call.1} parent=1 // pred_fallthru
      _
    // Predicated region
    $region30: #{tpu_custom_call.1} parent=1 // pred_check
      _
    $region31: #{tpu_custom_call.1} parent=1 // pred_check_branch
      %60 = sbr.rel (0) target = $region33
    $region32: #{tpu_custom_call.1} parent=1 // pred_region
      %61 = dma.done [#allocation6], 2048
    $region33: #{tpu_custom_call.1} parent=1 // pred_fallthru
      _
    // Predicated region
    $region34: #{tpu_custom_call.1} parent=1 // pred_check
      _
    $region35: #{tpu_custom_call.1} parent=1 // pred_check_branch
      %63 = sbr.rel (0) target = $region37
    $region36: #{tpu_custom_call.1} parent=1 // pred_region
      %64 = dma.done [#allocation6], 1024
    $region37: #{tpu_custom_call.1} parent=1 // pred_fallthru
      _
    %v66 = vld [vmem:[#allocation2] sm:$0xff]
    %v67 = vld [vmem:[#allocation2 + $0x8] sm:$0xff]
    %v68 = vld [vmem:[#allocation5] sm:$0xf]
    %v69 = vld [vmem:[#allocation5 + $0x4] sm:$0xf]
    %v70 = vld [vmem:[#allocation5 + $0x8] sm:$0xf]
    %v71 = vld [vmem:[#allocation5 + $0xc] sm:$0xf]
    %v72 = vld [vmem:[#allocation5 + $0x10] sm:$0xf]
    %v73 = vld [vmem:[#allocation5 + $0x14] sm:$0xf]
    %v74 = vld [vmem:[#allocation5 + $0x18] sm:$0xf]
    %v75 = vld [vmem:[#allocation5 + $0x1c] sm:$0xf]
    %v76 = vld [vmem:[#allocation5 + $0x20] sm:$0xf]
    %v77 = vld [vmem:[#allocation5 + $0x24] sm:$0xf]
    %v78 = vld [vmem:[#allocation5 + $0x28] sm:$0xf]
    %v79 = vld [vmem:[#allocation5 + $0x2c] sm:$0xf]
    %v80 = vld [vmem:[#allocation5 + $0x30] sm:$0xf]
    %v81 = vld [vmem:[#allocation5 + $0x34] sm:$0xf]
    %v82 = vld [vmem:[#allocation5 + $0x38] sm:$0xf]
    %v83 = vld [vmem:[#allocation5 + $0x3c] sm:$0xf]
    %v84 = vld [vmem:[#allocation5 + $0x40] sm:$0xf]
    %v85 = vld [vmem:[#allocation5 + $0x44] sm:$0xf]
    %v86 = vld [vmem:[#allocation5 + $0x48] sm:$0xf]
    %v87 = vld [vmem:[#allocation5 + $0x4c] sm:$0xf]
    %v88 = vld [vmem:[#allocation5 + $0x50] sm:$0xf]
    %v89 = vld [vmem:[#allocation5 + $0x54] sm:$0xf]
    %v90 = vld [vmem:[#allocation5 + $0x58] sm:$0xf]
    %v91 = vld [vmem:[#allocation5 + $0x5c] sm:$0xf]
    %v92 = vld [vmem:[#allocation5 + $0x60] sm:$0xf]
    %v93 = vld [vmem:[#allocation5 + $0x64] sm:$0xf]
    %v94 = vld [vmem:[#allocation5 + $0x68] sm:$0xf]
    %v95 = vld [vmem:[#allocation5 + $0x6c] sm:$0xf]
    %v96 = vld [vmem:[#allocation5 + $0x70] sm:$0xf]
    %v97 = vld [vmem:[#allocation5 + $0x74] sm:$0xf]
    %v98 = vld [vmem:[#allocation5 + $0x78] sm:$0xf]
    %v99 = vld [vmem:[#allocation5 + $0x7c] sm:$0xf]
    %v100 = vld [vmem:[%s3] sm:$0x1]
    %v102 = vlaneseq
    %v103 = vshrl.u32 %v102, 7
    %v104 = vsub.s32 0, %v103
    %v105 = vrot.slane %v100, %v104
    %v109 = vunpack.c.l.b16 %v66
    %v110 = vunpack.c.h.b16 %v66
    %v111 = vunpack.c.l.b16 %v67
    %v112 = vunpack.c.h.b16 %v67
    %v113 = vpack.c.b16 %v111, %v109
    %v114 = vpack.c.b16 %v112, %v110
    %v149 = vunpack.c.l.b16 %v68
    %v150 = vunpack.c.l.b16 %v69
    %v151 = vunpack.c.l.b16 %v70
    %v152 = vunpack.c.l.b16 %v71
    %v153 = vunpack.c.l.b16 %v72
    %v154 = vunpack.c.l.b16 %v73
    %v155 = vunpack.c.l.b16 %v74
    %v156 = vunpack.c.l.b16 %v75
    %v157 = vunpack.c.l.b16 %v76
    %v158 = vunpack.c.l.b16 %v77
    %v159 = vunpack.c.l.b16 %v78
    %v160 = vunpack.c.l.b16 %v79
    %v161 = vunpack.c.l.b16 %v80
    %v162 = vunpack.c.l.b16 %v81
    %v163 = vunpack.c.l.b16 %v82
    %v164 = vunpack.c.l.b16 %v83
    %v165 = vunpack.c.l.b16 %v84
    %v166 = vunpack.c.l.b16 %v85
    %v167 = vunpack.c.l.b16 %v86
    %v168 = vunpack.c.l.b16 %v87
    %v169 = vunpack.c.l.b16 %v88
    %v170 = vunpack.c.l.b16 %v89
    %v171 = vunpack.c.l.b16 %v90
    %v172 = vunpack.c.l.b16 %v91
    %v173 = vunpack.c.l.b16 %v92
    %v174 = vunpack.c.l.b16 %v93
    %v175 = vunpack.c.l.b16 %v94
    %v176 = vunpack.c.l.b16 %v95
    %v177 = vunpack.c.l.b16 %v96
    %v178 = vunpack.c.l.b16 %v97
    %v179 = vunpack.c.l.b16 %v98
    %v180 = vunpack.c.l.b16 %v99
    %v181 = vpack.c.b16 %v150, %v149
    %v182 = vpack.c.b16 %v152, %v151
    %v183 = vpack.c.b16 %v154, %v153
    %v184 = vpack.c.b16 %v156, %v155
    %v185 = vpack.c.b16 %v158, %v157
    %v186 = vpack.c.b16 %v160, %v159
    %v187 = vpack.c.b16 %v162, %v161
    %v188 = vpack.c.b16 %v164, %v163
    %v189 = vpack.c.b16 %v166, %v165
    %v190 = vpack.c.b16 %v168, %v167
    %v191 = vpack.c.b16 %v170, %v169
    %v192 = vpack.c.b16 %v172, %v171
    %v193 = vpack.c.b16 %v174, %v173
    %v194 = vpack.c.b16 %v176, %v175
    %v195 = vpack.c.b16 %v178, %v177
    %v196 = vpack.c.b16 %v180, %v179
    %213 = vmatprep.subr.bf16.mxu0 0
    %214 = vmatpush1.bf16.msra.mxu0 %v188
    %215 = vmatprep.subr.bf16.mxu0 0
    %216 = vmatpush1.bf16.msra.mxu0 %v187
    %217 = vmatprep.subr.bf16.mxu0 0
    %218 = vmatpush1.bf16.msra.mxu0 %v186
    %219 = vmatprep.subr.bf16.mxu0 0
    %220 = vmatpush1.bf16.msra.mxu0 %v185
    %221 = vmatprep.subr.bf16.mxu0 0
    %222 = vmatpush1.bf16.msra.mxu0 %v184
    %223 = vmatprep.subr.bf16.mxu0 0
    %224 = vmatpush1.bf16.msra.mxu0 %v183
    %225 = vmatprep.subr.bf16.mxu0 0
    %226 = vmatpush1.bf16.msra.mxu0 %v182
    %227 = vmatprep.subr.bf16.mxu0 0
    %228 = vmatpush1.bf16.msra.mxu0 %v181
    %229 = vmatprep.subr.bf16.mxu0 0
    %230 = vmatpush2.bf16.msra.mxu0 %v196
    %231 = vmatprep.subr.bf16.mxu0 0
    %232 = vmatpush2.bf16.msra.mxu0 %v195
    %233 = vmatprep.subr.bf16.mxu0 0
    %234 = vmatpush2.bf16.msra.mxu0 %v194
    %235 = vmatprep.subr.bf16.mxu0 0
    %236 = vmatpush2.bf16.msra.mxu0 %v193
    %237 = vmatprep.subr.bf16.mxu0 0
    %238 = vmatpush2.bf16.msra.mxu0 %v192
    %239 = vmatprep.subr.bf16.mxu0 0
    %240 = vmatpush2.bf16.msra.mxu0 %v191
    %241 = vmatprep.subr.bf16.mxu0 0
    %242 = vmatpush2.bf16.msra.mxu0 %v190
    %243 = vmatprep.subr.bf16.mxu0 0
    %244 = vmatpush2.bf16.msra.mxu0 %v189
    %245 = vmatprep.mubr.bf16.mxu0 %v114
    %246 = vmatmul.mubr.bf16.gmra.mxu0 %v113
    %v247 = vpop.f32.mrf.mxu0
    %v248 = vadd.f32 %v105, %v247
    %v249 = vpop.f32.mrf.mxu0
    %v250 = vpop.f32.mrf.mxu0
    %v251 = vadd.f32 %v105, %v250
    %v252 = vpop.f32.mrf.mxu0
    %253 = vdwg.mxu0
    %v254 = vmax.f32 %v248, 0.0
    %v255 = vmax.f32 %v251, 0.0
    %v256 = vpack.c.bf16 %v255, %v254
    %v257 = vld [vmem:[#allocation7] sm:$0xf]
    %v258 = vld [vmem:[#allocation7 + $0x4] sm:$0xf]
    %v259 = vld [vmem:[#allocation7 + $0x8] sm:$0xf]
    %v260 = vld [vmem:[#allocation7 + $0xc] sm:$0xf]
    %v261 = vld [vmem:[#allocation7 + $0x10] sm:$0xf]
    %v262 = vld [vmem:[#allocation7 + $0x14] sm:$0xf]
    %v263 = vld [vmem:[#allocation7 + $0x18] sm:$0xf]
    %v264 = vld [vmem:[#allocation7 + $0x1c] sm:$0xf]
    %v265 = vld [vmem:[#allocation7 + $0x20] sm:$0xf]
    %v266 = vld [vmem:[#allocation7 + $0x24] sm:$0xf]
    %v267 = vld [vmem:[#allocation7 + $0x28] sm:$0xf]
    %v268 = vld [vmem:[#allocation7 + $0x2c] sm:$0xf]
    %v269 = vld [vmem:[#allocation7 + $0x30] sm:$0xf]
    %v270 = vld [vmem:[#allocation7 + $0x34] sm:$0xf]
    %v271 = vld [vmem:[#allocation7 + $0x38] sm:$0xf]
    %v272 = vld [vmem:[#allocation7 + $0x3c] sm:$0xf]
    %v273 = vld [vmem:[%s5] sm:$0x1]
    %v275 = vlaneseq
    %v276 = vshrl.u32 %v275, 7
    %v277 = vsub.s32 0, %v276
    %v278 = vrot.slane %v273, %v277
    %v296 = vunpack.c.l.b16 %v257
    %v297 = vunpack.c.l.b16 %v258
    %v298 = vunpack.c.l.b16 %v259
    %v299 = vunpack.c.l.b16 %v260
    %v300 = vunpack.c.l.b16 %v261
    %v301 = vunpack.c.l.b16 %v262
    %v302 = vunpack.c.l.b16 %v263
    %v303 = vunpack.c.l.b16 %v264
    %v304 = vunpack.c.l.b16 %v265
    %v305 = vunpack.c.l.b16 %v266
    %v306 = vunpack.c.l.b16 %v267
    %v307 = vunpack.c.l.b16 %v268
    %v308 = vunpack.c.l.b16 %v269
    %v309 = vunpack.c.l.b16 %v270
    %v310 = vunpack.c.l.b16 %v271
    %v311 = vunpack.c.l.b16 %v272
    %v312 = vpack.c.b16 %v297, %v296
    %v313 = vpack.c.b16 %v299, %v298
    %v314 = vpack.c.b16 %v301, %v300
    %v315 = vpack.c.b16 %v303, %v302
    %v316 = vpack.c.b16 %v305, %v304
    %v317 = vpack.c.b16 %v307, %v306
    %v318 = vpack.c.b16 %v309, %v308
    %v319 = vpack.c.b16 %v311, %v310
    %328 = vmatprep.subr.bf16.mxu0 0
    %329 = vmatpush1.bf16.msra.mxu0 %v319
    %330 = vmatprep.subr.bf16.mxu0 0
    %331 = vmatpush1.bf16.msra.mxu0 %v318
    %332 = vmatprep.subr.bf16.mxu0 0
    %333 = vmatpush1.bf16.msra.mxu0 %v317
    %334 = vmatprep.subr.bf16.mxu0 0
    %335 = vmatpush1.bf16.msra.mxu0 %v316
    %336 = vmatprep.subr.bf16.mxu0 0
    %337 = vmatpush1.bf16.msra.mxu0 %v315
    %338 = vmatprep.subr.bf16.mxu0 0
    %339 = vmatpush1.bf16.msra.mxu0 %v314
    %340 = vmatprep.subr.bf16.mxu0 0
    %341 = vmatpush1.bf16.msra.mxu0 %v313
    %342 = vmatprep.subr.bf16.mxu0 0
    %343 = vmatpush1.bf16.msra.mxu0 %v312
    %344 = vmatprep.subr.bf16.mxu0 0
    %345 = vmatpush2.bf16.msra.mxu0 0
    %346 = vmatprep.subr.bf16.mxu0 0
    %347 = vmatpush2.bf16.msra.mxu0 0
    %348 = vmatprep.subr.bf16.mxu0 0
    %349 = vmatpush2.bf16.msra.mxu0 0
    %350 = vmatprep.subr.bf16.mxu0 0
    %351 = vmatpush2.bf16.msra.mxu0 0
    %352 = vmatprep.subr.bf16.mxu0 0
    %353 = vmatpush2.bf16.msra.mxu0 0
    %354 = vmatprep.subr.bf16.mxu0 0
    %355 = vmatpush2.bf16.msra.mxu0 0
    %356 = vmatprep.subr.bf16.mxu0 0
    %357 = vmatpush2.bf16.msra.mxu0 0
    %358 = vmatprep.subr.bf16.mxu0 0
    %359 = vmatpush2.bf16.msra.mxu0 0
    %360 = vmatprep.mubr.bf16.mxu0 0
    %361 = vmatmul.mubr.bf16.gmra.mxu0 %v256
    %v362 = vpop.f32.mrf.mxu0
    %v363 = vadd.f32 %v278, %v362
    %v364 = vpop.f32.mrf.mxu0
    %v365 = vpop.f32.mrf.mxu0
    %v366 = vadd.f32 %v278, %v365
    %v367 = vpop.f32.mrf.mxu0
    %368 = vdwg.mxu0
    %v369 = vlaneseq
    %v370 = vshrl.u32 %v369, 7
    %v371 = vadd.s32 %v370, 8
    %v372 = vadd.s32 %v370, 16
    %v373 = vadd.s32 %v370, 24
    %v374 = vadd.s32 %v370, 32
    %v375 = vadd.s32 %v370, 40
    %v376 = vadd.s32 %v370, 48
    %v377 = vadd.s32 %v370, 56
    %v378 = vadd.s32 %v370, 64
    %v379 = vadd.s32 %v370, 72
    %v380 = vadd.s32 %v370, 80
    %v381 = vadd.s32 %v370, 88
    %v382 = vadd.s32 %v370, 96
    %v383 = vadd.s32 %v370, 104
    %v384 = vadd.s32 %v370, 112
    %v385 = vadd.s32 %v370, 120
    %v386 = vld [vmem:[%s1] sm:$0x1]
    %v387 = vlaneseq
    %v388 = vshrl.u32 %v387, 7
    %v389 = vsub.s32 0, %v388
    %v390 = vrot.slane %v386, %v389
    %vm391 = vcmp.eq.s32.totalorder %v370, %v390
    %vm392 = vcmp.eq.s32.totalorder %v371, %v390
    %vm393 = vcmp.eq.s32.totalorder %v372, %v390
    %vm394 = vcmp.eq.s32.totalorder %v373, %v390
    %vm395 = vcmp.eq.s32.totalorder %v374, %v390
    %vm396 = vcmp.eq.s32.totalorder %v375, %v390
    %vm397 = vcmp.eq.s32.totalorder %v376, %v390
    %vm398 = vcmp.eq.s32.totalorder %v377, %v390
    %vm399 = vcmp.eq.s32.totalorder %v378, %v390
    %vm400 = vcmp.eq.s32.totalorder %v379, %v390
    %vm401 = vcmp.eq.s32.totalorder %v380, %v390
    %vm402 = vcmp.eq.s32.totalorder %v381, %v390
    %vm403 = vcmp.eq.s32.totalorder %v382, %v390
    %vm404 = vcmp.eq.s32.totalorder %v383, %v390
    %vm405 = vcmp.eq.s32.totalorder %v384, %v390
    %vm406 = vcmp.eq.s32.totalorder %v385, %v390
    %v407 = vsel %vm391, 1, 0
    %v408 = vsel %vm392, 1, 0
    %v409 = vsel %vm393, 1, 0
    %v410 = vsel %vm394, 1, 0
    %v411 = vsel %vm395, 1, 0
    %v412 = vsel %vm396, 1, 0
    %v413 = vsel %vm397, 1, 0
    %v414 = vsel %vm398, 1, 0
    %v415 = vsel %vm399, 1, 0
    %v416 = vsel %vm400, 1, 0
    %v417 = vsel %vm401, 1, 0
    %v418 = vsel %vm402, 1, 0
    %v419 = vsel %vm403, 1, 0
    %v420 = vsel %vm404, 1, 0
    %v421 = vsel %vm405, 1, 0
    %v422 = vsel %vm406, 1, 0
    %v423 = vcvt.s32.f32 %v407
    %v424 = vcvt.s32.f32 %v408
    %v425 = vcvt.s32.f32 %v409
    %v426 = vcvt.s32.f32 %v410
    %v427 = vcvt.s32.f32 %v411
    %v428 = vcvt.s32.f32 %v412
    %v429 = vcvt.s32.f32 %v413
    %v430 = vcvt.s32.f32 %v414
    %v431 = vcvt.s32.f32 %v415
    %v432 = vcvt.s32.f32 %v416
    %v433 = vcvt.s32.f32 %v417
    %v434 = vcvt.s32.f32 %v418
    %v435 = vcvt.s32.f32 %v419
    %v436 = vcvt.s32.f32 %v420
    %v437 = vcvt.s32.f32 %v421
    %v438 = vcvt.s32.f32 %v422
    %vm439 = vcmask 64512
    %v440 = vsel %vm439, %v423, 0.0
    %441 = vadd.xlane.f32.xlu0 %v440
    %v442 = vpop.xlane.xlu0 %441
    %v443 = vsel %vm439, %v424, 0.0
    %444 = vadd.xlane.f32.xlu0 %v443
    %v445 = vpop.xlane.xlu0 %444
    %v446 = vsel %vm439, %v425, 0.0
    %447 = vadd.xlane.f32.xlu0 %v446
    %v448 = vpop.xlane.xlu0 %447
    %v449 = vsel %vm439, %v426, 0.0
    %450 = vadd.xlane.f32.xlu0 %v449
    %v451 = vpop.xlane.xlu0 %450
    %v452 = vsel %vm439, %v427, 0.0
    %453 = vadd.xlane.f32.xlu0 %v452
    %v454 = vpop.xlane.xlu0 %453
    %v455 = vsel %vm439, %v428, 0.0
    %456 = vadd.xlane.f32.xlu0 %v455
    %v457 = vpop.xlane.xlu0 %456
    %v458 = vsel %vm439, %v429, 0.0
    %459 = vadd.xlane.f32.xlu0 %v458
    %v460 = vpop.xlane.xlu0 %459
    %v461 = vsel %vm439, %v430, 0.0
    %462 = vadd.xlane.f32.xlu0 %v461
    %v463 = vpop.xlane.xlu0 %462
    %v464 = vsel %vm439, %v431, 0.0
    %465 = vadd.xlane.f32.xlu0 %v464
    %v466 = vpop.xlane.xlu0 %465
    %v467 = vsel %vm439, %v432, 0.0
    %468 = vadd.xlane.f32.xlu0 %v467
    %v469 = vpop.xlane.xlu0 %468
    %v470 = vsel %vm439, %v433, 0.0
    %471 = vadd.xlane.f32.xlu0 %v470
    %v472 = vpop.xlane.xlu0 %471
    %v473 = vsel %vm439, %v434, 0.0
    %474 = vadd.xlane.f32.xlu0 %v473
    %v475 = vpop.xlane.xlu0 %474
    %v476 = vsel %vm439, %v435, 0.0
    %477 = vadd.xlane.f32.xlu0 %v476
    %v478 = vpop.xlane.xlu0 %477
    %v479 = vsel %vm439, %v436, 0.0
    %480 = vadd.xlane.f32.xlu0 %v479
    %v481 = vpop.xlane.xlu0 %480
    %v482 = vsel %vm439, %v437, 0.0
    %483 = vadd.xlane.f32.xlu0 %v482
    %v484 = vpop.xlane.xlu0 %483
    %v485 = vsel %vm439, %v438, 0.0
    %486 = vadd.xlane.f32.xlu0 %v485
    %v487 = vpop.xlane.xlu0 %486
    %v488 = vmax.f32 %v442, 1.0
    %v489 = vmax.f32 %v445, 1.0
    %v490 = vmax.f32 %v448, 1.0
    %v491 = vmax.f32 %v451, 1.0
    %v492 = vmax.f32 %v454, 1.0
    %v493 = vmax.f32 %v457, 1.0
    %v494 = vmax.f32 %v460, 1.0
    %v495 = vmax.f32 %v463, 1.0
    %v496 = vmax.f32 %v466, 1.0
    %v497 = vmax.f32 %v469, 1.0
    %v498 = vmax.f32 %v472, 1.0
    %v499 = vmax.f32 %v475, 1.0
    %v500 = vmax.f32 %v478, 1.0
    %v501 = vmax.f32 %v481, 1.0
    %v502 = vmax.f32 %v484, 1.0
    %v503 = vmax.f32 %v487, 1.0
    %v504 = vrcp.pop %v488
    %v505 = vmul.f32 %v423, %v504
    %v506 = vrcp.pop %v489
    %v507 = vmul.f32 %v424, %v506
    %v508 = vrcp.pop %v490
    %v509 = vmul.f32 %v425, %v508
    %v510 = vrcp.pop %v491
    %v511 = vmul.f32 %v426, %v510
    %v512 = vrcp.pop %v492
    %v513 = vmul.f32 %v427, %v512
    %v514 = vrcp.pop %v493
    %v515 = vmul.f32 %v428, %v514
    %v516 = vrcp.pop %v494
    %v517 = vmul.f32 %v429, %v516
    %v518 = vrcp.pop %v495
    %v519 = vmul.f32 %v430, %v518
    %v520 = vrcp.pop %v496
    %v521 = vmul.f32 %v431, %v520
    %v522 = vrcp.pop %v497
    %v523 = vmul.f32 %v432, %v522
    %v524 = vrcp.pop %v498
    %v525 = vmul.f32 %v433, %v524
    %v526 = vrcp.pop %v499
    %v527 = vmul.f32 %v434, %v526
    %v528 = vrcp.pop %v500
    %v529 = vmul.f32 %v435, %v528
    %v530 = vrcp.pop %v501
    %v531 = vmul.f32 %v436, %v530
    %v532 = vrcp.pop %v502
    %v533 = vmul.f32 %v437, %v532
    %v534 = vrcp.pop %v503
    %v535 = vmul.f32 %v438, %v534
    %v537 = vsel %vm439, %v505, 0
    %v540 = vsel %vm439, %v507, 0
    %v543 = vsel %vm439, %v509, 0
    %v546 = vsel %vm439, %v511, 0
    %v549 = vsel %vm439, %v513, 0
    %v552 = vsel %vm439, %v515, 0
    %v555 = vsel %vm439, %v517, 0
    %v558 = vsel %vm439, %v519, 0
    %v561 = vsel %vm439, %v521, 0
    %v564 = vsel %vm439, %v523, 0
    %v567 = vsel %vm439, %v525, 0
    %v570 = vsel %vm439, %v527, 0
    %v573 = vsel %vm439, %v529, 0
    %v576 = vsel %vm439, %v531, 0
    %v579 = vsel %vm439, %v533, 0
    %v582 = vsel %vm439, %v535, 0
    %584 = vmatprep.subr.mxu0 0.0
    %585 = vmatpush1.msra.mxu0 0.0
    %586 = vmatprep.subr.mxu0 0.0
    %587 = vmatpush1.msra.mxu0 0.0
    %588 = vmatprep.subr.mxu0 0.0
    %589 = vmatpush1.msra.mxu0 0.0
    %590 = vmatprep.subr.mxu0 0.0
    %591 = vmatpush1.msra.mxu0 0.0
    %592 = vmatprep.subr.mxu0 0.0
    %593 = vmatpush1.msra.mxu0 0.0
    %594 = vmatprep.subr.mxu0 0.0
    %595 = vmatpush1.msra.mxu0 0.0
    %596 = vmatprep.subr.mxu0 0.0
    %597 = vmatpush1.msra.mxu0 0.0
    %598 = vmatprep.subr.mxu0 0.0
    %599 = vmatpush1.msra.mxu0 0.0
    %600 = vmatprep.subr.mxu0 0.0
    %601 = vmatpush1.msra.mxu0 0.0
    %602 = vmatprep.subr.mxu0 0.0
    %603 = vmatpush1.msra.mxu0 0.0
    %604 = vmatprep.subr.mxu0 0.0
    %605 = vmatpush1.msra.mxu0 0.0
    %606 = vmatprep.subr.mxu0 0.0
    %607 = vmatpush1.msra.mxu0 0.0
    %608 = vmatprep.subr.mxu0 0.0
    %609 = vmatpush1.msra.mxu0 0.0
    %610 = vmatprep.subr.mxu0 0.0
    %611 = vmatpush1.msra.mxu0 0.0
    %612 = vmatprep.subr.mxu0 0.0
    %613 = vmatpush1.msra.mxu0 0.0
    %614 = vmatprep.subr.mxu0 0.0
    %615 = vmatpush1.msra.mxu0 %v363
    %616 = vmatprep.subr.mxu0 0.0
    %617 = vmatpush2.msra.mxu0 0.0
    %618 = vmatprep.subr.mxu0 0.0
    %619 = vmatpush2.msra.mxu0 0.0
    %620 = vmatprep.subr.mxu0 0.0
    %621 = vmatpush2.msra.mxu0 0.0
    %622 = vmatprep.subr.mxu0 0.0
    %623 = vmatpush2.msra.mxu0 0.0
    %624 = vmatprep.subr.mxu0 0.0
    %625 = vmatpush2.msra.mxu0 0.0
    %626 = vmatprep.subr.mxu0 0.0
    %627 = vmatpush2.msra.mxu0 0.0
    %628 = vmatprep.subr.mxu0 0.0
    %629 = vmatpush2.msra.mxu0 0.0
    %630 = vmatprep.subr.mxu0 0.0
    %631 = vmatpush2.msra.mxu0 0.0
    %632 = vmatprep.subr.mxu0 0.0
    %633 = vmatpush2.msra.mxu0 0.0
    %634 = vmatprep.subr.mxu0 0.0
    %635 = vmatpush2.msra.mxu0 0.0
    %636 = vmatprep.subr.mxu0 0.0
    %637 = vmatpush2.msra.mxu0 0.0
    %638 = vmatprep.subr.mxu0 0.0
    %639 = vmatpush2.msra.mxu0 0.0
    %640 = vmatprep.subr.mxu0 0.0
    %641 = vmatpush2.msra.mxu0 0.0
    %642 = vmatprep.subr.mxu0 0.0
    %643 = vmatpush2.msra.mxu0 0.0
    %644 = vmatprep.subr.mxu0 0.0
    %645 = vmatpush2.msra.mxu0 0.0
    %646 = vmatprep.subr.mxu0 0.0
    %647 = vmatpush2.msra.mxu0 0.0
    %648 = vmatprep.mubr.f32.mxu0 0.0
    %649 = vmatmul.mubr.f32.gmra.mxu0 %v537
    %v650 = vpop.f32.mrf.mxu0
    %v651 = vadd.f32 0.0, %v650
    %v652 = vpop.f32.mrf.mxu0
    %653 = vmatprep.mubr.f32.mxu0 0.0
    %654 = vmatmul.mubr.f32.gmra.mxu0 %v540
    %v655 = vpop.f32.mrf.mxu0
    %v656 = vadd.f32 0.0, %v655
    %v657 = vpop.f32.mrf.mxu0
    %658 = vmatprep.mubr.f32.mxu0 0.0
    %659 = vmatmul.mubr.f32.gmra.mxu0 %v543
    %v660 = vpop.f32.mrf.mxu0
    %v661 = vadd.f32 0.0, %v660
    %v662 = vpop.f32.mrf.mxu0
    %663 = vmatprep.mubr.f32.mxu0 0.0
    %664 = vmatmul.mubr.f32.gmra.mxu0 %v546
    %v665 = vpop.f32.mrf.mxu0
    %v666 = vadd.f32 0.0, %v665
    %v667 = vpop.f32.mrf.mxu0
    %668 = vmatprep.mubr.f32.mxu0 0.0
    %669 = vmatmul.mubr.f32.gmra.mxu0 %v549
    %v670 = vpop.f32.mrf.mxu0
    %v671 = vadd.f32 0.0, %v670
    %v672 = vpop.f32.mrf.mxu0
    %673 = vmatprep.mubr.f32.mxu0 0.0
    %674 = vmatmul.mubr.f32.gmra.mxu0 %v552
    %v675 = vpop.f32.mrf.mxu0
    %v676 = vadd.f32 0.0, %v675
    %v677 = vpop.f32.mrf.mxu0
    %678 = vmatprep.mubr.f32.mxu0 0.0
    %679 = vmatmul.mubr.f32.gmra.mxu0 %v555
    %v680 = vpop.f32.mrf.mxu0
    %v681 = vadd.f32 0.0, %v680
    %v682 = vpop.f32.mrf.mxu0
    %683 = vmatprep.mubr.f32.mxu0 0.0
    %684 = vmatmul.mubr.f32.gmra.mxu0 %v558
    %v685 = vpop.f32.mrf.mxu0
    %v686 = vadd.f32 0.0, %v685
    %v687 = vpop.f32.mrf.mxu0
    %688 = vmatprep.mubr.f32.mxu0 0.0
    %689 = vmatmul.mubr.f32.gmra.mxu0 %v561
    %v690 = vpop.f32.mrf.mxu0
    %v691 = vadd.f32 0.0, %v690
    %v692 = vpop.f32.mrf.mxu0
    %693 = vmatprep.mubr.f32.mxu0 0.0
    %694 = vmatmul.mubr.f32.gmra.mxu0 %v564
    %v695 = vpop.f32.mrf.mxu0
    %v696 = vadd.f32 0.0, %v695
    %v697 = vpop.f32.mrf.mxu0
    %698 = vmatprep.mubr.f32.mxu0 0.0
    %699 = vmatmul.mubr.f32.gmra.mxu0 %v567
    %v700 = vpop.f32.mrf.mxu0
    %v701 = vadd.f32 0.0, %v700
    %v702 = vpop.f32.mrf.mxu0
    %703 = vmatprep.mubr.f32.mxu0 0.0
    %704 = vmatmul.mubr.f32.gmra.mxu0 %v570
    %v705 = vpop.f32.mrf.mxu0
    %v706 = vadd.f32 0.0, %v705
    %v707 = vpop.f32.mrf.mxu0
    %708 = vmatprep.mubr.f32.mxu0 0.0
    %709 = vmatmul.mubr.f32.gmra.mxu0 %v573
    %v710 = vpop.f32.mrf.mxu0
    %v711 = vadd.f32 0.0, %v710
    %v712 = vpop.f32.mrf.mxu0
    %713 = vmatprep.mubr.f32.mxu0 0.0
    %714 = vmatmul.mubr.f32.gmra.mxu0 %v576
    %v715 = vpop.f32.mrf.mxu0
    %v716 = vadd.f32 0.0, %v715
    %v717 = vpop.f32.mrf.mxu0
    %718 = vmatprep.mubr.f32.mxu0 0.0
    %719 = vmatmul.mubr.f32.gmra.mxu0 %v579
    %v720 = vpop.f32.mrf.mxu0
    %v721 = vadd.f32 0.0, %v720
    %v722 = vpop.f32.mrf.mxu0
    %723 = vmatprep.mubr.f32.mxu0 0.0
    %724 = vmatmul.mubr.f32.gmra.mxu0 %v582
    %v725 = vpop.f32.mrf.mxu0
    %v726 = vadd.f32 0.0, %v725
    %v727 = vpop.f32.mrf.mxu0
    %728 = vdwg.mxu0
    %729 = vmatprep.subr.mxu0 0.0
    %730 = vmatpush1.xpose.msra.mxu0 %v726
    %731 = vmatprep.subr.mxu0 0.0
    %732 = vmatpush1.xpose.msra.mxu0 %v721
    %733 = vmatprep.subr.mxu0 0.0
    %734 = vmatpush1.xpose.msra.mxu0 %v716
    %735 = vmatprep.subr.mxu0 0.0
    %736 = vmatpush1.xpose.msra.mxu0 %v711
    %737 = vmatprep.subr.mxu0 0.0
    %738 = vmatpush1.xpose.msra.mxu0 %v706
    %739 = vmatprep.subr.mxu0 0.0
    %740 = vmatpush1.xpose.msra.mxu0 %v701
    %741 = vmatprep.subr.mxu0 0.0
    %742 = vmatpush1.xpose.msra.mxu0 %v696
    %743 = vmatprep.subr.mxu0 0.0
    %744 = vmatpush1.xpose.msra.mxu0 %v691
    %745 = vmatprep.subr.mxu0 0.0
    %746 = vmatpush1.xpose.msra.mxu0 %v686
    %747 = vmatprep.subr.mxu0 0.0
    %748 = vmatpush1.xpose.msra.mxu0 %v681
    %749 = vmatprep.subr.mxu0 0.0
    %750 = vmatpush1.xpose.msra.mxu0 %v676
    %751 = vmatprep.subr.mxu0 0.0
    %752 = vmatpush1.xpose.msra.mxu0 %v671
    %753 = vmatprep.subr.mxu0 0.0
    %754 = vmatpush1.xpose.msra.mxu0 %v666
    %755 = vmatprep.subr.mxu0 0.0
    %756 = vmatpush1.xpose.msra.mxu0 %v661
    %757 = vmatprep.subr.mxu0 0.0
    %758 = vmatpush1.xpose.msra.mxu0 %v656
    %759 = vmatprep.subr.mxu0 0.0
    %760 = vmatpush1.xpose.msra.mxu0 %v651
    %761 = vmatprep.subr.mxu0 0.0
    %762 = vmatpush2.xpose.msra.mxu0 0.0
    %763 = vmatprep.subr.mxu0 0.0
    %764 = vmatpush2.xpose.msra.mxu0 0.0
    %765 = vmatprep.subr.mxu0 0.0
    %766 = vmatpush2.xpose.msra.mxu0 0.0
    %767 = vmatprep.subr.mxu0 0.0
    %768 = vmatpush2.xpose.msra.mxu0 0.0
    %769 = vmatprep.subr.mxu0 0.0
    %770 = vmatpush2.xpose.msra.mxu0 0.0
    %771 = vmatprep.subr.mxu0 0.0
    %772 = vmatpush2.xpose.msra.mxu0 0.0
    %773 = vmatprep.subr.mxu0 0.0
    %774 = vmatpush2.xpose.msra.mxu0 0.0
    %775 = vmatprep.subr.mxu0 0.0
    %776 = vmatpush2.xpose.msra.mxu0 0.0
    %777 = vmatprep.subr.mxu0 0.0
    %778 = vmatpush2.xpose.msra.mxu0 0.0
    %779 = vmatprep.subr.mxu0 0.0
    %780 = vmatpush2.xpose.msra.mxu0 0.0
    %781 = vmatprep.subr.mxu0 0.0
    %782 = vmatpush2.xpose.msra.mxu0 0.0
    %783 = vmatprep.subr.mxu0 0.0
    %784 = vmatpush2.xpose.msra.mxu0 0.0
    %785 = vmatprep.subr.mxu0 0.0
    %786 = vmatpush2.xpose.msra.mxu0 0.0
    %787 = vmatprep.subr.mxu0 0.0
    %788 = vmatpush2.xpose.msra.mxu0 0.0
    %789 = vmatprep.subr.mxu0 0.0
    %790 = vmatpush2.xpose.msra.mxu0 0.0
    %791 = vmatprep.subr.mxu0 0.0
    %792 = vmatpush2.xpose.msra.mxu0 0.0
    %793 = vmatprep.mubr.f32.mxu0 0.0
    %794 = vmatmul.mubr.f32.gmra.mxu0 %v366
    %v795 = vpop.f32.mrf.mxu0
    %v796 = vadd.f32 0.0, %v795
    %v797 = vpop.f32.mrf.mxu0
    %798 = vdwg.mxu0
    %v799 = vmul.f32 %v651, %v651
    %v800 = vmul.f32 %v656, %v656
    %v801 = vmul.f32 %v661, %v661
    %v802 = vmul.f32 %v666, %v666
    %v803 = vmul.f32 %v671, %v671
    %v804 = vmul.f32 %v676, %v676
    %v805 = vmul.f32 %v681, %v681
    %v806 = vmul.f32 %v686, %v686
    %v807 = vmul.f32 %v691, %v691
    %v808 = vmul.f32 %v696, %v696
    %v809 = vmul.f32 %v701, %v701
    %v810 = vmul.f32 %v706, %v706
    %v811 = vmul.f32 %v711, %v711
    %v812 = vmul.f32 %v716, %v716
    %v813 = vmul.f32 %v721, %v721
    %v814 = vmul.f32 %v726, %v726
    %815 = vmatprep.subr.mxu0 0.0
    %816 = vmatpush1.xpose.msra.mxu0 %v814
    %817 = vmatprep.subr.mxu0 0.0
    %818 = vmatpush1.xpose.msra.mxu0 %v813
    %819 = vmatprep.subr.mxu0 0.0
    %820 = vmatpush1.xpose.msra.mxu0 %v812
    %821 = vmatprep.subr.mxu0 0.0
    %822 = vmatpush1.xpose.msra.mxu0 %v811
    %823 = vmatprep.subr.mxu0 0.0
    %824 = vmatpush1.xpose.msra.mxu0 %v810
    %825 = vmatprep.subr.mxu0 0.0
    %826 = vmatpush1.xpose.msra.mxu0 %v809
    %827 = vmatprep.subr.mxu0 0.0
    %828 = vmatpush1.xpose.msra.mxu0 %v808
    %829 = vmatprep.subr.mxu0 0.0
    %830 = vmatpush1.xpose.msra.mxu0 %v807
    %831 = vmatprep.subr.mxu0 0.0
    %832 = vmatpush1.xpose.msra.mxu0 %v806
    %833 = vmatprep.subr.mxu0 0.0
    %834 = vmatpush1.xpose.msra.mxu0 %v805
    %835 = vmatprep.subr.mxu0 0.0
    %836 = vmatpush1.xpose.msra.mxu0 %v804
    %837 = vmatprep.subr.mxu0 0.0
    %838 = vmatpush1.xpose.msra.mxu0 %v803
    %839 = vmatprep.subr.mxu0 0.0
    %840 = vmatpush1.xpose.msra.mxu0 %v802
    %841 = vmatprep.subr.mxu0 0.0
    %842 = vmatpush1.xpose.msra.mxu0 %v801
    %843 = vmatprep.subr.mxu0 0.0
    %844 = vmatpush1.xpose.msra.mxu0 %v800
    %845 = vmatprep.subr.mxu0 0.0
    %846 = vmatpush1.xpose.msra.mxu0 %v799
    %847 = vmatprep.subr.mxu0 0.0
    %848 = vmatpush2.xpose.msra.mxu0 0.0
    %849 = vmatprep.subr.mxu0 0.0
    %850 = vmatpush2.xpose.msra.mxu0 0.0
    %851 = vmatprep.subr.mxu0 0.0
    %852 = vmatpush2.xpose.msra.mxu0 0.0
    %853 = vmatprep.subr.mxu0 0.0
    %854 = vmatpush2.xpose.msra.mxu0 0.0
    %855 = vmatprep.subr.mxu0 0.0
    %856 = vmatpush2.xpose.msra.mxu0 0.0
    %857 = vmatprep.subr.mxu0 0.0
    %858 = vmatpush2.xpose.msra.mxu0 0.0
    %859 = vmatprep.subr.mxu0 0.0
    %860 = vmatpush2.xpose.msra.mxu0 0.0
    %861 = vmatprep.subr.mxu0 0.0
    %862 = vmatpush2.xpose.msra.mxu0 0.0
    %863 = vmatprep.subr.mxu0 0.0
    %864 = vmatpush2.xpose.msra.mxu0 0.0
    %865 = vmatprep.subr.mxu0 0.0
    %866 = vmatpush2.xpose.msra.mxu0 0.0
    %867 = vmatprep.subr.mxu0 0.0
    %868 = vmatpush2.xpose.msra.mxu0 0.0
    %869 = vmatprep.subr.mxu0 0.0
    %870 = vmatpush2.xpose.msra.mxu0 0.0
    %871 = vmatprep.subr.mxu0 0.0
    %872 = vmatpush2.xpose.msra.mxu0 0.0
    %873 = vmatprep.subr.mxu0 0.0
    %874 = vmatpush2.xpose.msra.mxu0 0.0
    %875 = vmatprep.subr.mxu0 0.0
    %876 = vmatpush2.xpose.msra.mxu0 0.0
    %877 = vmatprep.subr.mxu0 0.0
    %878 = vmatpush2.xpose.msra.mxu0 0.0
    %879 = vmatprep.mubr.f32.mxu0 0.0
    %880 = vmatmul.mubr.f32.gmra.mxu0 1.0
    %v881 = vpop.f32.mrf.mxu0
    %v882 = vadd.f32 0.0, %v881
    %v883 = vpop.f32.mrf.mxu0
    %884 = vdwg.mxu0
    %v885 = vmul.f32 %v366, %v366
    %886 = vadd.xlane.f32.xlu0 %v885
    %v887 = vpop.xlane.xlu0 %886
    %v888 = vlaneseq
    %v889 = vshrl.u32 %v888, 7
    %v890 = vsub.s32 0, %v889
    %v891 = vrot.slane %v882, %v890
    %v892 = vadd.f32 %v887, %v891
    %v893 = vmul.f32 %v796, 2.0
    %v894 = vsub.f32 %v892, %v893
    %v895 = vmax.f32 %v894, 0.0
    %v896 = vrsqrt.pop %v895
    %v897 = vmul.f32 %v895, %v896
    %vm898 = vcmp.eq.f32.partialorder %v895, inf
    %v899 = vsel %vm898, %v895, %v897
    %vm900 = vcmp.eq.f32.partialorder %v895, 0.0
    %v901 = vand.u32 %v895, 2147483648
    %v902 = vsel %vm900, %v901, %v899
    %v903 = vsub.f32 0.0, %v902
    %904 = vst [vmem:[#allocation8] sm:$0xff] %v903
    // Predicated region
    $region38: #{tpu_custom_call.1} parent=1 // pred_check
      _
    $region39: #{tpu_custom_call.1} parent=1 // pred_check_branch
      %906 = sbr.rel (0) target = $region41
    $region40: #{tpu_custom_call.1} parent=1 // pred_region
      %s908 = ssub.s32 128, 128
      %909 = vsyncadd [#allocation4], %s908
      %s911 = sshll.u32 [#allocation8], 4
      %s912 = int_to_ptr.vmem [resolvable:$true] %s911
      %914 = dma.vmem_to_hbm [thread:$0]  %s912, 128, %s6, [#allocation4]
    $region41: #{tpu_custom_call.1} parent=1 // pred_fallthru
      _
    // Predicated region
    $region42: #{tpu_custom_call.1} parent=1 // pred_check
      _
    $region43: #{tpu_custom_call.1} parent=1 // pred_check_branch
      %916 = sbr.rel (0) target = $region45
    $region44: #{tpu_custom_call.1} parent=1 // pred_region
      %917 = dma.done [#allocation4], 128
    $region45: #{tpu_custom_call.1} parent=1 // pred_fallthru
      _
    %918 = vsyncpa [#allocation3], 1
    %919 = vsyncpa [#allocation6], 1
    %920 = vsyncpa [#allocation4], 1

</llo_original>
